<compile_context>
chip_gen: v5e
topology: v5e:2x2
jax: 0.10.0
libtpu: 0.0.40
codegen_flags: <defaults>
</compile_context>

<pallas_src>
import jax
import jax.numpy as jnp
from jax import lax
from jax.experimental import pallas as pl
from jax.experimental.pallas import tpu as pltpu


# Prefer the widest lane-dense view that divides the element count exactly.
_LANE_CANDIDATES = (4096, 2048, 1024, 512, 256, 128)


def _native_compute(dtype):
    dt = jnp.dtype(dtype)
    return dt == jnp.dtype(jnp.float32) or dt == jnp.dtype(jnp.bfloat16)


def _swish_kernel(x_ref, o_ref):
    x = x_ref[...]
    if _native_compute(x.dtype):
        # Native-precision compute (bf16 VPU/EUP on v6e/v7x; Mosaic handles v5e).
        y = x * lax.logistic(x)
    else:
        xf = x.astype(jnp.float32)
        y = xf * lax.logistic(xf)
    o_ref[...] = y.astype(o_ref.dtype)


def _swish_jnp(x):
    # Plain-JAX fallback matching the kernel's numerics (tiny tails only).
    if _native_compute(x.dtype):
        return x * lax.logistic(x)
    xf = x.astype(jnp.float32)
    return (xf * lax.logistic(xf)).astype(x.dtype)


def _sublane(dtype):
    # Native sublane tile: 8 for 4-byte, 16 for 2-byte, 32 for 1-byte dtypes.
    return max(8, 32 // jnp.dtype(dtype).itemsize)


def _chip_block_bytes():
    """Target block size per TPU generation for a memory-bound elementwise op."""
    kind = ""
    try:
        kind = jax.devices()[0].device_kind.lower()
    except Exception:
        pass
    if "7x" in kind or "v7" in kind:
        return 8 << 20          # v7x: 3.2 TB/s HBM, 64 MiB VMEM -> biggest blocks
    if "v6" in kind:
        return 4 << 20          # v6e: elementwise roofline plateaus ~1-4 MiB
    return 2 << 20              # v5e / unknown: stay inside 16 MiB default scoped VMEM


def _swish_2d(x2d, *, block_bytes, donate=False):
    rows, lanes = x2d.shape
    dtype = x2d.dtype
    itemsize = jnp.dtype(dtype).itemsize
    sub = _sublane(dtype)
    total_bytes = rows * lanes * itemsize

    # ~block_bytes per block, rounded down to the dtype's sublane tile.
    max_tile_rows = max(sub, (block_bytes // (lanes * itemsize) // sub) * sub)

    if rows > max_tile_rows:
        tile_rows = max_tile_rows
    elif total_bytes > (1 << 20) and rows >= 2 * sub:
        # Keep >= 2 grid steps so both v7x TensorCores get work and in/out DMAs
        # of adjacent steps can overlap (partial last block is fine).
        tile_rows = ((pl.cdiv(rows, 2) + sub - 1) // sub) * sub
    else:
        tile_rows = rows                     # single full-extent block

    grid = (pl.cdiv(rows, tile_rows),)
    block_actual = tile_rows * lanes * itemsize

    # in + out, double-buffered => ~4x block bytes of VMEM.  Only raise the
    # scoped limit when we exceed what the conservative 16 MiB default (v5e)
    # holds; blocks > 2 MiB only happen on detected v6e/v7x (128 / 64 MiB
    # physical VMEM), where a 32-48 MiB scoped limit is safe.
    vmem_limit = None
    if block_actual > (2 << 20):
        vmem_limit = min(max(4 * block_actual + (8 << 20), 32 << 20), 48 << 20)

    n = rows * lanes
    cost = pl.CostEstimate(flops=n, transcendentals=n,
                           bytes_accessed=2 * n * itemsize)

    extra = {"input_output_aliases": {0: 0}} if donate else {}

    return pl.pallas_call(
        _swish_kernel,
        out_shape=jax.ShapeDtypeStruct((rows, lanes), dtype),
        grid_spec=pltpu.PrefetchScalarGridSpec(
            num_scalar_prefetch=0,
            grid=grid,
            in_specs=[pl.BlockSpec((tile_rows, lanes), lambda i: (i, 0))],
            out_specs=pl.BlockSpec((tile_rows, lanes), lambda i: (i, 0)),
        ),
        compiler_params=pltpu.CompilerParams(
            dimension_semantics=("parallel",),
            vmem_limit_bytes=vmem_limit,
        ),
        cost_estimate=cost,
        **extra,
    )(x2d)


def swish(x, *, donate=False):
    """Elementwise swish / SiLU: x * sigmoid(x), any shape, any float dtype.

    `donate=True` aliases the Pallas output onto the input buffer
    (input_output_aliases={0: 0}); only enable it when the caller donates `x`
    at a jit boundary.  It is ignored on the (rare) ragged-size path, where the
    kernel input is a temporary view anyway.
    """
    orig_shape = x.shape
    n = x.size
    if n == 0:
        return x
    block_bytes = _chip_block_bytes()

    # Fast path: lane-dense 2D view that divides the element count exactly
    # (true for essentially all NN activation shapes) -- no pad, no extra copies.
    lanes = next((c for c in _LANE_CANDIDATES if n % c == 0), None)
    if lanes is not None:
        out2d = _swish_2d(x.reshape(n // lanes, lanes),
                          block_bytes=block_bytes, donate=donate)
        return out2d.reshape(orig_shape)

    # Ragged fallback: no full-array pad/slice HBM round trip.  Kernel on the
    # largest lane-multiple prefix, tiny tail (< 4096 elems) in plain jnp.
    flat = x.reshape(-1)
    lanes = next((c for c in _LANE_CANDIDATES if c <= n), None)
    if lanes is None:
        # Fewer than 128 elements: a kernel launch isn't worth it.
        return _swish_jnp(flat).reshape(orig_shape)
    n_main = (n // lanes) * lanes
    main_out = _swish_2d(flat[:n_main].reshape(n_main // lanes, lanes),
                         block_bytes=block_bytes, donate=False)
    tail_out = _swish_jnp(flat[n_main:])
    return jnp.concatenate([main_out.reshape(-1), tail_out]).reshape(orig_shape)


if __name__ == "__main__":
    key = jax.random.PRNGKey(0)
    k0, k1, k2, k3 = jax.random.split(key, 4)

    # NCDHW activation consistent with efficientnet3D: batch=2, channels=4,
    # depth=8, spatial=16x16 -> 16384 elems, pad-free lane-dense path.
    x = jax.random.normal(k0, (2, 4, 8, 16, 16), dtype=jnp.float32)
    y = jax.block_until_ready(swish(x))
    ref = x * jax.nn.sigmoid(x)
    assert y.shape == x.shape and y.dtype == x.dtype
    assert jnp.allclose(y, ref, atol=1e-6, rtol=1e-6)

    # bf16 path (native-dtype compute inside the kernel).
    xb = jax.random.normal(k1, (2, 4, 16, 16), dtype=jnp.bfloat16)
    yb = jax.block_until_ready(swish(xb))
    refb = xb * jax.nn.sigmoid(xb)
    assert yb.shape == xb.shape and yb.dtype == xb.dtype
    assert jnp.allclose(yb.astype(jnp.float32), refb.astype(jnp.float32),
                        atol=1e-2, rtol=1e-2)

    # Ragged size > 128 elems: kernel on the lane-multiple prefix + jnp tail.
    x2 = jax.random.normal(k2, (2, 4, 129), dtype=jnp.float32)   # 1032 elems
    y2 = jax.block_until_ready(swish(x2))
    ref2 = x2 * jax.nn.sigmoid(x2)
    assert y2.shape == x2.shape and y2.dtype == x2.dtype
    assert jnp.allclose(y2, ref2, atol=1e-6, rtol=1e-6)

    # Tiny ragged size (< 128 elems): plain-jnp path.
    x3 = jax.random.normal(k3, (3, 5, 7), dtype=jnp.float32)
    y3 = jax.block_until_ready(swish(x3))
    ref3 = x3 * jax.nn.sigmoid(x3)
    assert y3.shape == x3.shape and y3.dtype == x3.dtype
    assert jnp.allclose(y3, ref3, atol=1e-6, rtol=1e-6)

    print("KERNEL_OK")
</pallas_src>

<mosaic_0001>
module attributes {stable_mosaic.version = 11 : i64} {
  func.func @_swish_kernel(%arg0: i32, %arg1: memref<4x4096xf32, #tpu.memory_space<vmem>>, %arg2: memref<4x4096xf32, #tpu.memory_space<vmem>>) attributes {dimension_semantics = [#tpu.dimension_semantics<parallel>], iteration_bounds = array<i64: 1>, scalar_prefetch = 0 : i64, scratch_operands = 0 : i64, tpu.core_type = #tpu.core_type<tc>, window_params = [{transform_indices = @transform_0, window_bounds = array<i64: 4, 4096>}, {transform_indices = @transform_1, window_bounds = array<i64: 4, 4096>}]} {
    %c0 = arith.constant 0 : index
    %c0_0 = arith.constant 0 : index
    %0 = vector.load %arg1[%c0, %c0_0] : memref<4x4096xf32, #tpu.memory_space<vmem>>, vector<4x4096xf32>
    %1 = arith.negf %0 : vector<4x4096xf32>
    %2 = math.exp %1 : vector<4x4096xf32>
    %cst = arith.constant 1.000000e+00 : f32
    %3 = vector.broadcast %cst : f32 to vector<4x4096xf32>
    %4 = arith.addf %3, %2 : vector<4x4096xf32>
    %5 = arith.divf %3, %4 : vector<4x4096xf32>
    %6 = arith.mulf %0, %5 : vector<4x4096xf32>
    %c0_1 = arith.constant 0 : index
    %c0_2 = arith.constant 0 : index
    %7 = vector.load %arg2[%c0_1, %c0_2] : memref<4x4096xf32, #tpu.memory_space<vmem>>, vector<4x4096xf32>
    tpu.vector_store %arg2[%c0_1, %c0_2], %6 {strides = array<i32>} : memref<4x4096xf32, #tpu.memory_space<vmem>>, vector<4x4096xf32>,
    return
  }
  func.func @transform_0(%arg0: i32) -> (i32, i32) {
    %c0_i32 = arith.constant 0 : i32
    %c0_i32_0 = arith.constant 0 : i32
    return %arg0, %c0_i32 : i32, i32
  }
  func.func @transform_1(%arg0: i32) -> (i32, i32) {
    %c0_i32 = arith.constant 0 : i32
    %c0_i32_0 = arith.constant 0 : i32
    return %arg0, %c0_i32 : i32, i32
  }
}

</mosaic_0001>

<llo_original>
// kernel: tpu_custom_call.1
$region0: #{tpu_custom_call.1}
  #allocation0 [shape = 'u32[]', space=smem, size = 0x4, offset = 0x4, fixed_abs, tag = 'smem constant byte address 0x4 - core index']
  #allocation1 [shape = 'u32[72,128]{1,0:T(1,128)}', space=vmem, size = 0x9000, scoped, tag = 'internal scratch']
  %s0 = inlined_call_operand.hbm [shape: f32[4,4096], index: 0, kind: input, shape index: {}]
  %s1 = inlined_call_operand.hbm [shape: f32[4,4096], index: 1, kind: output, shape index: {}]
  %s2 = sld [smem:[#allocation0]]
  $region18: #{tpu_custom_call.1} parent=0
    _
  %s4 = ssub.s32 1, %s2
  %s5 = scalar_select 0, %s4, %s2
  $region1: #{tpu_custom_call.1} parent=0
    #allocation2 [shape = 'u8[65536]{0}', space=vmem, size = 0x10000, scoped, tag = 'input window, operand 0, single buffered']
    #allocation3 [shape = 's32[1]{0}', space=sflag, size = 0x4, scoped, tag = 'scoped memory for tpu_custom_call.1']
    #allocation4 [shape = 's32[1]{0}', space=sflag, size = 0x4, scoped, tag = 'scoped memory for tpu_custom_call.1']
    #allocation5 [shape = 'u8[65536]{0}', space=vmem, size = 0x10000, scoped, tag = 'output window, operand 0, single buffered']
    %6 = vsyncpa [#allocation3], 0
    %7 = vsyncpa [#allocation4], 0
    // Predicated region
    $region2: #{tpu_custom_call.1} parent=1 // pred_check
      _
    $region3: #{tpu_custom_call.1} parent=1 // pred_check_branch
      %9 = sbr.rel (0) target = $region5
    $region4: #{tpu_custom_call.1} parent=1 // pred_region
      %11 = vsyncadd [#allocation3], 0
      %s13 = sshll.u32 %s0, 4
      %s14 = int_to_ptr.hbm [resolvable:$true] %s13
      %s15 = sshll.u32 [#allocation2], 4
      %s16 = int_to_ptr.vmem [resolvable:$true] %s15
      %18 = dma.hbm_to_vmem [thread:$0]  %s14, 2048, %s16, [#allocation3]
    $region5: #{tpu_custom_call.1} parent=1 // pred_fallthru
      _
    // Predicated region
    $region6: #{tpu_custom_call.1} parent=1 // pred_check
      _
    $region7: #{tpu_custom_call.1} parent=1 // pred_check_branch
      %20 = sbr.rel (0) target = $region9
    $region8: #{tpu_custom_call.1} parent=1 // pred_region
      %22 = dma.done [#allocation3], 2048
    $region9: #{tpu_custom_call.1} parent=1 // pred_fallthru
      _
    %v23 = vld [vmem:[#allocation2] sm:$0xff]
    %v24 = vld [vmem:[#allocation2 + $0x8] sm:$0xff]
    %v25 = vld [vmem:[#allocation2 + $0x10] sm:$0xff]
    %v26 = vld [vmem:[#allocation2 + $0x18] sm:$0xff]
    %v27 = vld [vmem:[#allocation2 + $0x20] sm:$0xff]
    %v28 = vld [vmem:[#allocation2 + $0x28] sm:$0xff]
    %v29 = vld [vmem:[#allocation2 + $0x30] sm:$0xff]
    %v30 = vld [vmem:[#allocation2 + $0x38] sm:$0xff]
    %v31 = vld [vmem:[#allocation2 + $0x40] sm:$0xff]
    %v32 = vld [vmem:[#allocation2 + $0x48] sm:$0xff]
    %v33 = vld [vmem:[#allocation2 + $0x50] sm:$0xff]
    %v34 = vld [vmem:[#allocation2 + $0x58] sm:$0xff]
    %v35 = vld [vmem:[#allocation2 + $0x60] sm:$0xff]
    %v36 = vld [vmem:[#allocation2 + $0x68] sm:$0xff]
    %v37 = vld [vmem:[#allocation2 + $0x70] sm:$0xff]
    %v38 = vld [vmem:[#allocation2 + $0x78] sm:$0xff]
    %v39 = vxor.u32 %v23, 2147483648
    %v40 = vxor.u32 %v24, 2147483648
    %v41 = vxor.u32 %v25, 2147483648
    %v42 = vxor.u32 %v26, 2147483648
    %v43 = vxor.u32 %v27, 2147483648
    %v44 = vxor.u32 %v28, 2147483648
    %v45 = vxor.u32 %v29, 2147483648
    %v46 = vxor.u32 %v30, 2147483648
    %v47 = vxor.u32 %v31, 2147483648
    %v48 = vxor.u32 %v32, 2147483648
    %v49 = vxor.u32 %v33, 2147483648
    %v50 = vxor.u32 %v34, 2147483648
    %v51 = vxor.u32 %v35, 2147483648
    %v52 = vxor.u32 %v36, 2147483648
    %v53 = vxor.u32 %v37, 2147483648
    %v54 = vxor.u32 %v38, 2147483648
    %v55 = vmul.f32 %v39, 1.442695
    %v56 = vpow.pop %v55
    %v57 = vmul.f32 %v40, 1.442695
    %v58 = vpow.pop %v57
    %v59 = vmul.f32 %v41, 1.442695
    %v60 = vpow.pop %v59
    %v61 = vmul.f32 %v42, 1.442695
    %v62 = vpow.pop %v61
    %v63 = vmul.f32 %v43, 1.442695
    %v64 = vpow.pop %v63
    %v65 = vmul.f32 %v44, 1.442695
    %v66 = vpow.pop %v65
    %v67 = vmul.f32 %v45, 1.442695
    %v68 = vpow.pop %v67
    %v69 = vmul.f32 %v46, 1.442695
    %v70 = vpow.pop %v69
    %v71 = vmul.f32 %v47, 1.442695
    %v72 = vpow.pop %v71
    %v73 = vmul.f32 %v48, 1.442695
    %v74 = vpow.pop %v73
    %v75 = vmul.f32 %v49, 1.442695
    %v76 = vpow.pop %v75
    %v77 = vmul.f32 %v50, 1.442695
    %v78 = vpow.pop %v77
    %v79 = vmul.f32 %v51, 1.442695
    %v80 = vpow.pop %v79
    %v81 = vmul.f32 %v52, 1.442695
    %v82 = vpow.pop %v81
    %v83 = vmul.f32 %v53, 1.442695
    %v84 = vpow.pop %v83
    %v85 = vmul.f32 %v54, 1.442695
    %v86 = vpow.pop %v85
    %v87 = vadd.f32 %v56, 1.0
    %v88 = vadd.f32 %v58, 1.0
    %v89 = vadd.f32 %v60, 1.0
    %v90 = vadd.f32 %v62, 1.0
    %v91 = vadd.f32 %v64, 1.0
    %v92 = vadd.f32 %v66, 1.0
    %v93 = vadd.f32 %v68, 1.0
    %v94 = vadd.f32 %v70, 1.0
    %v95 = vadd.f32 %v72, 1.0
    %v96 = vadd.f32 %v74, 1.0
    %v97 = vadd.f32 %v76, 1.0
    %v98 = vadd.f32 %v78, 1.0
    %v99 = vadd.f32 %v80, 1.0
    %v100 = vadd.f32 %v82, 1.0
    %v101 = vadd.f32 %v84, 1.0
    %v102 = vadd.f32 %v86, 1.0
    %v103 = vrcp.pop %v87
    %v104 = vmul.f32 %v87, %v103
    %v105 = vsub.f32 1.0, %v104
    %v106 = vmul.f32 %v103, %v105
    %v107 = vadd.f32 %v103, %v106
    %vm108 = vweird.f32 %v87
    %vm109 = vweird.f32 %v103
    %vm110 = vmor %vm108, %vm109
    %v111 = vsel %vm110, %v103, %v107
    %v112 = vand.u32 2147483647, %v87
    %vm113 = vcmp.eq.f32.partialorder %v112, 8.507059e+37
    %v114 = vand.u32 %v87, 2147483648
    %v115 = vor.u32 1.1754944e-38, %v114
    %v116 = vsel %vm113, %v115, %v111
    %v117 = vmul.f32 1.0, %v116
    %v118 = vrcp.pop %v88
    %v119 = vmul.f32 %v88, %v118
    %v120 = vsub.f32 1.0, %v119
    %v121 = vmul.f32 %v118, %v120
    %v122 = vadd.f32 %v118, %v121
    %vm123 = vweird.f32 %v88
    %vm124 = vweird.f32 %v118
    %vm125 = vmor %vm123, %vm124
    %v126 = vsel %vm125, %v118, %v122
    %v127 = vand.u32 2147483647, %v88
    %vm128 = vcmp.eq.f32.partialorder %v127, 8.507059e+37
    %v129 = vand.u32 %v88, 2147483648
    %v130 = vor.u32 1.1754944e-38, %v129
    %v131 = vsel %vm128, %v130, %v126
    %v132 = vmul.f32 1.0, %v131
    %v133 = vrcp.pop %v89
    %v134 = vmul.f32 %v89, %v133
    %v135 = vsub.f32 1.0, %v134
    %v136 = vmul.f32 %v133, %v135
    %v137 = vadd.f32 %v133, %v136
    %vm138 = vweird.f32 %v89
    %vm139 = vweird.f32 %v133
    %vm140 = vmor %vm138, %vm139
    %v141 = vsel %vm140, %v133, %v137
    %v142 = vand.u32 2147483647, %v89
    %vm143 = vcmp.eq.f32.partialorder %v142, 8.507059e+37
    %v144 = vand.u32 %v89, 2147483648
    %v145 = vor.u32 1.1754944e-38, %v144
    %v146 = vsel %vm143, %v145, %v141
    %v147 = vmul.f32 1.0, %v146
    %v148 = vrcp.pop %v90
    %v149 = vmul.f32 %v90, %v148
    %v150 = vsub.f32 1.0, %v149
    %v151 = vmul.f32 %v148, %v150
    %v152 = vadd.f32 %v148, %v151
    %vm153 = vweird.f32 %v90
    %vm154 = vweird.f32 %v148
    %vm155 = vmor %vm153, %vm154
    %v156 = vsel %vm155, %v148, %v152
    %v157 = vand.u32 2147483647, %v90
    %vm158 = vcmp.eq.f32.partialorder %v157, 8.507059e+37
    %v159 = vand.u32 %v90, 2147483648
    %v160 = vor.u32 1.1754944e-38, %v159
    %v161 = vsel %vm158, %v160, %v156
    %v162 = vmul.f32 1.0, %v161
    %v163 = vrcp.pop %v91
    %v164 = vmul.f32 %v91, %v163
    %v165 = vsub.f32 1.0, %v164
    %v166 = vmul.f32 %v163, %v165
    %v167 = vadd.f32 %v163, %v166
    %vm168 = vweird.f32 %v91
    %vm169 = vweird.f32 %v163
    %vm170 = vmor %vm168, %vm169
    %v171 = vsel %vm170, %v163, %v167
    %v172 = vand.u32 2147483647, %v91
    %vm173 = vcmp.eq.f32.partialorder %v172, 8.507059e+37
    %v174 = vand.u32 %v91, 2147483648
    %v175 = vor.u32 1.1754944e-38, %v174
    %v176 = vsel %vm173, %v175, %v171
    %v177 = vmul.f32 1.0, %v176
    %v178 = vrcp.pop %v92
    %v179 = vmul.f32 %v92, %v178
    %v180 = vsub.f32 1.0, %v179
    %v181 = vmul.f32 %v178, %v180
    %v182 = vadd.f32 %v178, %v181
    %vm183 = vweird.f32 %v92
    %vm184 = vweird.f32 %v178
    %vm185 = vmor %vm183, %vm184
    %v186 = vsel %vm185, %v178, %v182
    %v187 = vand.u32 2147483647, %v92
    %vm188 = vcmp.eq.f32.partialorder %v187, 8.507059e+37
    %v189 = vand.u32 %v92, 2147483648
    %v190 = vor.u32 1.1754944e-38, %v189
    %v191 = vsel %vm188, %v190, %v186
    %v192 = vmul.f32 1.0, %v191
    %v193 = vrcp.pop %v93
    %v194 = vmul.f32 %v93, %v193
    %v195 = vsub.f32 1.0, %v194
    %v196 = vmul.f32 %v193, %v195
    %v197 = vadd.f32 %v193, %v196
    %vm198 = vweird.f32 %v93
    %vm199 = vweird.f32 %v193
    %vm200 = vmor %vm198, %vm199
    %v201 = vsel %vm200, %v193, %v197
    %v202 = vand.u32 2147483647, %v93
    %vm203 = vcmp.eq.f32.partialorder %v202, 8.507059e+37
    %v204 = vand.u32 %v93, 2147483648
    %v205 = vor.u32 1.1754944e-38, %v204
    %v206 = vsel %vm203, %v205, %v201
    %v207 = vmul.f32 1.0, %v206
    %v208 = vrcp.pop %v94
    %v209 = vmul.f32 %v94, %v208
    %v210 = vsub.f32 1.0, %v209
    %v211 = vmul.f32 %v208, %v210
    %v212 = vadd.f32 %v208, %v211
    %vm213 = vweird.f32 %v94
    %vm214 = vweird.f32 %v208
    %vm215 = vmor %vm213, %vm214
    %v216 = vsel %vm215, %v208, %v212
    %v217 = vand.u32 2147483647, %v94
    %vm218 = vcmp.eq.f32.partialorder %v217, 8.507059e+37
    %v219 = vand.u32 %v94, 2147483648
    %v220 = vor.u32 1.1754944e-38, %v219
    %v221 = vsel %vm218, %v220, %v216
    %v222 = vmul.f32 1.0, %v221
    %v223 = vrcp.pop %v95
    %v224 = vmul.f32 %v95, %v223
    %v225 = vsub.f32 1.0, %v224
    %v226 = vmul.f32 %v223, %v225
    %v227 = vadd.f32 %v223, %v226
    %vm228 = vweird.f32 %v95
    %vm229 = vweird.f32 %v223
    %vm230 = vmor %vm228, %vm229
    %v231 = vsel %vm230, %v223, %v227
    %v232 = vand.u32 2147483647, %v95
    %vm233 = vcmp.eq.f32.partialorder %v232, 8.507059e+37
    %v234 = vand.u32 %v95, 2147483648
    %v235 = vor.u32 1.1754944e-38, %v234
    %v236 = vsel %vm233, %v235, %v231
    %v237 = vmul.f32 1.0, %v236
    %v238 = vrcp.pop %v96
    %v239 = vmul.f32 %v96, %v238
    %v240 = vsub.f32 1.0, %v239
    %v241 = vmul.f32 %v238, %v240
    %v242 = vadd.f32 %v238, %v241
    %vm243 = vweird.f32 %v96
    %vm244 = vweird.f32 %v238
    %vm245 = vmor %vm243, %vm244
    %v246 = vsel %vm245, %v238, %v242
    %v247 = vand.u32 2147483647, %v96
    %vm248 = vcmp.eq.f32.partialorder %v247, 8.507059e+37
    %v249 = vand.u32 %v96, 2147483648
    %v250 = vor.u32 1.1754944e-38, %v249
    %v251 = vsel %vm248, %v250, %v246
    %v252 = vmul.f32 1.0, %v251
    %v253 = vrcp.pop %v97
    %v254 = vmul.f32 %v97, %v253
    %v255 = vsub.f32 1.0, %v254
    %v256 = vmul.f32 %v253, %v255
    %v257 = vadd.f32 %v253, %v256
    %vm258 = vweird.f32 %v97
    %vm259 = vweird.f32 %v253
    %vm260 = vmor %vm258, %vm259
    %v261 = vsel %vm260, %v253, %v257
    %v262 = vand.u32 2147483647, %v97
    %vm263 = vcmp.eq.f32.partialorder %v262, 8.507059e+37
    %v264 = vand.u32 %v97, 2147483648
    %v265 = vor.u32 1.1754944e-38, %v264
    %v266 = vsel %vm263, %v265, %v261
    %v267 = vmul.f32 1.0, %v266
    %v268 = vrcp.pop %v98
    %v269 = vmul.f32 %v98, %v268
    %v270 = vsub.f32 1.0, %v269
    %v271 = vmul.f32 %v268, %v270
    %v272 = vadd.f32 %v268, %v271
    %vm273 = vweird.f32 %v98
    %vm274 = vweird.f32 %v268
    %vm275 = vmor %vm273, %vm274
    %v276 = vsel %vm275, %v268, %v272
    %v277 = vand.u32 2147483647, %v98
    %vm278 = vcmp.eq.f32.partialorder %v277, 8.507059e+37
    %v279 = vand.u32 %v98, 2147483648
    %v280 = vor.u32 1.1754944e-38, %v279
    %v281 = vsel %vm278, %v280, %v276
    %v282 = vmul.f32 1.0, %v281
    %v283 = vrcp.pop %v99
    %v284 = vmul.f32 %v99, %v283
    %v285 = vsub.f32 1.0, %v284
    %v286 = vmul.f32 %v283, %v285
    %v287 = vadd.f32 %v283, %v286
    %vm288 = vweird.f32 %v99
    %vm289 = vweird.f32 %v283
    %vm290 = vmor %vm288, %vm289
    %v291 = vsel %vm290, %v283, %v287
    %v292 = vand.u32 2147483647, %v99
    %vm293 = vcmp.eq.f32.partialorder %v292, 8.507059e+37
    %v294 = vand.u32 %v99, 2147483648
    %v295 = vor.u32 1.1754944e-38, %v294
    %v296 = vsel %vm293, %v295, %v291
    %v297 = vmul.f32 1.0, %v296
    %v298 = vrcp.pop %v100
    %v299 = vmul.f32 %v100, %v298
    %v300 = vsub.f32 1.0, %v299
    %v301 = vmul.f32 %v298, %v300
    %v302 = vadd.f32 %v298, %v301
    %vm303 = vweird.f32 %v100
    %vm304 = vweird.f32 %v298
    %vm305 = vmor %vm303, %vm304
    %v306 = vsel %vm305, %v298, %v302
    %v307 = vand.u32 2147483647, %v100
    %vm308 = vcmp.eq.f32.partialorder %v307, 8.507059e+37
    %v309 = vand.u32 %v100, 2147483648
    %v310 = vor.u32 1.1754944e-38, %v309
    %v311 = vsel %vm308, %v310, %v306
    %v312 = vmul.f32 1.0, %v311
    %v313 = vrcp.pop %v101
    %v314 = vmul.f32 %v101, %v313
    %v315 = vsub.f32 1.0, %v314
    %v316 = vmul.f32 %v313, %v315
    %v317 = vadd.f32 %v313, %v316
    %vm318 = vweird.f32 %v101
    %vm319 = vweird.f32 %v313
    %vm320 = vmor %vm318, %vm319
    %v321 = vsel %vm320, %v313, %v317
    %v322 = vand.u32 2147483647, %v101
    %vm323 = vcmp.eq.f32.partialorder %v322, 8.507059e+37
    %v324 = vand.u32 %v101, 2147483648
    %v325 = vor.u32 1.1754944e-38, %v324
    %v326 = vsel %vm323, %v325, %v321
    %v327 = vmul.f32 1.0, %v326
    %v328 = vrcp.pop %v102
    %v329 = vmul.f32 %v102, %v328
    %v330 = vsub.f32 1.0, %v329
    %v331 = vmul.f32 %v328, %v330
    %v332 = vadd.f32 %v328, %v331
    %vm333 = vweird.f32 %v102
    %vm334 = vweird.f32 %v328
    %vm335 = vmor %vm333, %vm334
    %v336 = vsel %vm335, %v328, %v332
    %v337 = vand.u32 2147483647, %v102
    %vm338 = vcmp.eq.f32.partialorder %v337, 8.507059e+37
    %v339 = vand.u32 %v102, 2147483648
    %v340 = vor.u32 1.1754944e-38, %v339
    %v341 = vsel %vm338, %v340, %v336
    %v342 = vmul.f32 1.0, %v341
    %v343 = vmul.f32 %v23, %v117
    %v344 = vmul.f32 %v24, %v132
    %v345 = vmul.f32 %v25, %v147
    %v346 = vmul.f32 %v26, %v162
    %v347 = vmul.f32 %v27, %v177
    %v348 = vmul.f32 %v28, %v192
    %v349 = vmul.f32 %v29, %v207
    %v350 = vmul.f32 %v30, %v222
    %v351 = vmul.f32 %v31, %v237
    %v352 = vmul.f32 %v32, %v252
    %v353 = vmul.f32 %v33, %v267
    %v354 = vmul.f32 %v34, %v282
    %v355 = vmul.f32 %v35, %v297
    %v356 = vmul.f32 %v36, %v312
    %v357 = vmul.f32 %v37, %v327
    %v358 = vmul.f32 %v38, %v342
    %359 = vst [vmem:[#allocation5] sm:$0xff] %v343
    %360 = vst [vmem:[#allocation5 + $0x8] sm:$0xff] %v344
    %361 = vst [vmem:[#allocation5 + $0x10] sm:$0xff] %v345
    %362 = vst [vmem:[#allocation5 + $0x18] sm:$0xff] %v346
    %363 = vst [vmem:[#allocation5 + $0x20] sm:$0xff] %v347
    %364 = vst [vmem:[#allocation5 + $0x28] sm:$0xff] %v348
    %365 = vst [vmem:[#allocation5 + $0x30] sm:$0xff] %v349
    %366 = vst [vmem:[#allocation5 + $0x38] sm:$0xff] %v350
    %367 = vst [vmem:[#allocation5 + $0x40] sm:$0xff] %v351
    %368 = vst [vmem:[#allocation5 + $0x48] sm:$0xff] %v352
    %369 = vst [vmem:[#allocation5 + $0x50] sm:$0xff] %v353
    %370 = vst [vmem:[#allocation5 + $0x58] sm:$0xff] %v354
    %371 = vst [vmem:[#allocation5 + $0x60] sm:$0xff] %v355
    %372 = vst [vmem:[#allocation5 + $0x68] sm:$0xff] %v356
    %373 = vst [vmem:[#allocation5 + $0x70] sm:$0xff] %v357
    %374 = vst [vmem:[#allocation5 + $0x78] sm:$0xff] %v358
    // Predicated region
    $region10: #{tpu_custom_call.1} parent=1 // pred_check
      _
    $region11: #{tpu_custom_call.1} parent=1 // pred_check_branch
      %376 = sbr.rel (0) target = $region13
    $region12: #{tpu_custom_call.1} parent=1 // pred_region
      %378 = vsyncadd [#allocation4], 0
      %s380 = sshll.u32 [#allocation5], 4
      %s381 = int_to_ptr.vmem [resolvable:$true] %s380
      %s382 = sshll.u32 %s1, 4
      %s383 = int_to_ptr.hbm [resolvable:$true] %s382
      %385 = dma.vmem_to_hbm [thread:$0]  %s381, 2048, %s383, [#allocation4]
    $region13: #{tpu_custom_call.1} parent=1 // pred_fallthru
      _
    // Predicated region
    $region14: #{tpu_custom_call.1} parent=1 // pred_check
      _
    $region15: #{tpu_custom_call.1} parent=1 // pred_check_branch
      %387 = sbr.rel (0) target = $region17
    $region16: #{tpu_custom_call.1} parent=1 // pred_region
      %389 = dma.done [#allocation4], 2048
    $region17: #{tpu_custom_call.1} parent=1 // pred_fallthru
      _
    %390 = vsyncpa [#allocation3], 1
    %391 = vsyncpa [#allocation4], 1

</llo_original>
